<compile_context>
chip_gen: v6e
topology: v6e:2x2x1
jax: 0.10.0
libtpu: 0.0.40
codegen_flags: <defaults>
</compile_context>

<pallas_src>
import jax
import jax.numpy as jnp
from jax.experimental import pallas as pl
from jax.experimental.pallas import tpu as pltpu


def _round_up(n, m):
    return ((n + m - 1) // m) * m


def _cdiv(a, b):
    return (a + b - 1) // b


def _default_vmem_limit_bytes():
    # ~75% of per-core VMEM, capped at 96 MiB:
    #   v7x  (64 MiB/TC)  -> 48 MiB   (do NOT copy a v6e-sized limit here)
    #   v5e/v6e (128 MiB) -> 96 MiB
    try:
        cap = int(pltpu.get_tpu_info().vmem_capacity_bytes)
    except Exception:
        cap = 64 * 1024 * 1024  # conservative fallback = v7x per-TC VMEM
    return int(min(cap * 3 // 4, 96 * 1024 * 1024))


def _regression_head_kernel(x_ref, w1_ref, b1_ref, w2_ref, b2_ref, o_ref):
    # x_ref:  (TB, D)  batch tile (rows on sublanes, features on lanes); f32 or bf16
    # w1_ref: (D, H)   resident first-layer weight (same dtype as x)
    # b1_ref: (1, H)   resident first-layer bias (f32)
    # w2_ref: (1, H)   resident second-layer weight, PyTorch Linear(H, 1).weight layout (f32)
    # b2_ref: (1,)     second-layer bias, SMEM scalar (f32)
    # o_ref:  (1, TB)  lane-dense f32 output tile
    h = jnp.dot(x_ref[...], w1_ref[...], preferred_element_type=jnp.float32)
    h = jnp.maximum(h + b1_ref[...], 0.0)                      # Linear1 + ReLU (f32)
    # Second layer as (1,H) contracted with (TB,H) over H -> (1,TB): the reduced row is
    # produced directly in the lane-dense output layout (no 1-lane-wide masked stores).
    y = jax.lax.dot_general(
        w2_ref[...], h,
        dimension_numbers=(((1,), (1,)), ((), ())),
        preferred_element_type=jnp.float32)                    # (1, TB)
    y = jax.nn.sigmoid(y + b2_ref[0])                          # Linear2 + Sigmoid (f32)
    o_ref[...] = (y * 4.0 + 1.0).astype(o_ref.dtype)           # * 4 + 1


def _plan_tile(B, D, H, x_itemsize, w_itemsize, vmem_limit, resident_buffers, tile_b):
    if tile_b is None:
        # Honest accounting against the scoped-VMEM limit:
        #   resident:  w1 (D*H) + b1/w2 (~2*H f32), times their buffer count
        #   per-row:   x tile (double-buffered) + f32 h intermediate + f32 out row (x2)
        resident = resident_buffers * (D * H * w_itemsize + 2 * H * 4)
        budget = (vmem_limit * 85) // 100 - resident          # ~15% compiler headroom
        per_row = 2 * D * x_itemsize + H * 4 + 2 * 4
        tile_b = budget // per_row
    tile_b = int(min(tile_b, 16384))
    tile_b = max((tile_b // 128) * 128, 128)   # lane-dense out blocks need %128 when grid > 1
    if B > 256:
        # Keep at least 2 grid steps so both v7x TensorCores get a shard.
        tile_b = min(tile_b, max(_round_up(_cdiv(B, 2), 128), 128))
    if tile_b >= B:
        tile_b = B            # single full-extent block: no 128-alignment requirement
    grid_b = _cdiv(B, tile_b)
    return tile_b, grid_b, grid_b * tile_b


def _run(x, w1, b1, w2, b2, out_dtype, tile_b, vmem_limit, resident_buffers):
    B, D = x.shape
    H = w1.shape[1]
    x_itemsize = jnp.dtype(x.dtype).itemsize
    w_itemsize = jnp.dtype(w1.dtype).itemsize
    tb, grid_b, b_pad = _plan_tile(B, D, H, x_itemsize, w_itemsize,
                                   vmem_limit, resident_buffers, tile_b)

    if resident_buffers == 1:
        def res_spec(shape):
            # Constant index_map -> never re-fetched; single buffer halves its VMEM cost.
            return pl.BlockSpec(shape, lambda i: (0, 0), pipeline_mode=pl.Buffered(1))
    else:
        def res_spec(shape):
            return pl.BlockSpec(shape, lambda i: (0, 0))

    out_row = pl.pallas_call(
        _regression_head_kernel,
        out_shape=jax.ShapeDtypeStruct((1, b_pad), out_dtype),
        grid_spec=pltpu.PrefetchScalarGridSpec(
            num_scalar_prefetch=0,
            grid=(grid_b,),
            in_specs=[
                pl.BlockSpec((tb, D), lambda i: (i, 0)),           # x: tiled over batch
                res_spec((D, H)),                                  # w1: resident
                res_spec((1, H)),                                  # b1: resident
                res_spec((1, H)),                                  # w2: resident
                pl.BlockSpec(memory_space=pltpu.MemorySpace.SMEM), # b2: scalar in SMEM
            ],
            out_specs=pl.BlockSpec((1, tb), lambda i: (0, i)),     # lane-dense output
        ),
        compiler_params=pltpu.CompilerParams(
            dimension_semantics=("parallel",),   # batch tiles shard across TCs on v7x
            vmem_limit_bytes=int(vmem_limit),
        ),
    )(x, w1, b1, w2, b2)

    # Columns >= B come from the (bounded, unspecified) tail of the last partial x block;
    # they depend only on their own (out-of-range) row and are dropped here.
    return out_row[0, :B].reshape(B, 1)


def regression_head(x, w1, b1, w2, b2, *, compute_dtype=None, tile_b=None,
                    vmem_limit_bytes=None):
    """x: (B, D) -> (B, 1) float32, matching RegressionHead.forward.

    compute_dtype=jnp.bfloat16 halves the dominant HBM read of x (keep f32 accumulation
    and epilogue in-kernel); accuracy impact ~1e-3..1e-2 on the [1, 5] output range.
    """
    if vmem_limit_bytes is None:
        vmem_limit_bytes = _default_vmem_limit_bytes()
    if compute_dtype is not None:
        x = x.astype(compute_dtype)
        w1 = w1.astype(compute_dtype)
    b1 = b1.astype(jnp.float32)
    w2 = w2.astype(jnp.float32)
    b2 = b2.astype(jnp.float32)
    out_dtype = jnp.float32

    try:
        return _run(x, w1, b1, w2, b2, out_dtype, tile_b, vmem_limit_bytes,
                    resident_buffers=1)
    except Exception:
        # pl.Buffered(1) (single-buffered resident weights) not accepted by this jax
        # version / backend -> fall back to default double-buffered resident specs.
        return _run(x, w1, b1, w2, b2, out_dtype, tile_b, vmem_limit_bytes,
                    resident_buffers=2)


def init_params(key, input_dim):
    """Deterministic synthetic params matching nn.Linear shapes (w1 pre-transposed)."""
    hidden = input_dim // 2
    k1, k2, k3, k4 = jax.random.split(key, 4)
    # PyTorch Linear default init: U(-1/sqrt(fan_in), 1/sqrt(fan_in))
    lim1 = 1.0 / jnp.sqrt(jnp.float32(input_dim))
    lim2 = 1.0 / jnp.sqrt(jnp.float32(hidden))
    w1 = jax.random.uniform(k1, (input_dim, hidden), jnp.float32, -lim1, lim1)
    b1 = jax.random.uniform(k2, (1, hidden), jnp.float32, -lim1, lim1)
    w2 = jax.random.uniform(k3, (1, hidden), jnp.float32, -lim2, lim2)  # Linear(H,1).weight
    b2 = jax.random.uniform(k4, (1,), jnp.float32, -lim2, lim2)
    return w1, b1, w2, b2


def reference(x, w1, b1, w2, b2):
    h = jnp.maximum(x @ w1 + b1, 0.0)
    y = jax.nn.sigmoid(h @ w2.T + b2)
    return y * 4.0 + 1.0


if __name__ == "__main__":
    key = jax.random.PRNGKey(0)
    kx, kp = jax.random.split(key)

    batch = 6           # deliberately not a multiple of 8: exercises the partial boundary block
    input_dim = 32      # hidden = 16, output = 1

    x = jax.random.normal(kx, (batch, input_dim), jnp.float32)
    w1, b1, w2, b2 = init_params(kp, input_dim)
    ref = reference(x, w1, b1, w2, b2)

    # Strict f32 path (module semantics).
    out = regression_head(x, w1, b1, w2, b2)
    out = jax.block_until_ready(out)
    assert out.shape == (batch, 1)
    assert jnp.allclose(out, ref, atol=1e-5, rtol=1e-5), "f32 mismatch vs JAX reference"

    # bf16-input path (halves the dominant HBM read of x; f32 accumulation/epilogue).
    out_bf16 = regression_head(x, w1, b1, w2, b2, compute_dtype=jnp.bfloat16)
    out_bf16 = jax.block_until_ready(out_bf16)
    assert out_bf16.shape == (batch, 1)
    assert jnp.allclose(out_bf16, ref, atol=3e-2, rtol=0.0), "bf16 mismatch vs JAX reference"

    print("KERNEL_OK")
</pallas_src>

<mosaic_0001>
module attributes {stable_mosaic.version = 11 : i64} {
  func.func @_regression_head_kernel(%arg0: i32, %arg1: memref<6x32xf32, #tpu.memory_space<vmem>>, %arg2: memref<32x16xf32, #tpu.memory_space<vmem>>, %arg3: memref<1x16xf32, #tpu.memory_space<vmem>>, %arg4: memref<1x16xf32, #tpu.memory_space<vmem>>, %arg5: memref<1xf32, #tpu.memory_space<smem>>, %arg6: memref<1x6xf32, #tpu.memory_space<vmem>>) attributes {dimension_semantics = [#tpu.dimension_semantics<parallel>], iteration_bounds = array<i64: 1>, scalar_prefetch = 0 : i64, scratch_operands = 0 : i64, tpu.core_type = #tpu.core_type<tc>, window_params = [{transform_indices = @transform_0, window_bounds = array<i64: 6, 32>}, {pipeline_mode = #tpu.pipeline_mode<synchronous>, transform_indices = @transform_1, window_bounds = array<i64: 32, 16>}, {pipeline_mode = #tpu.pipeline_mode<synchronous>, transform_indices = @transform_2, window_bounds = array<i64: 1, 16>}, {pipeline_mode = #tpu.pipeline_mode<synchronous>, transform_indices = @transform_3, window_bounds = array<i64: 1, 16>}, {transform_indices = @transform_4, window_bounds = array<i64: 1>}, {transform_indices = @transform_5, window_bounds = array<i64: 1, 6>}]} {
    %c0 = arith.constant 0 : index
    %c0_0 = arith.constant 0 : index
    %0 = vector.load %arg1[%c0, %c0_0] : memref<6x32xf32, #tpu.memory_space<vmem>>, vector<6x32xf32>
    %c0_1 = arith.constant 0 : index
    %c0_2 = arith.constant 0 : index
    %1 = vector.load %arg2[%c0_1, %c0_2] : memref<32x16xf32, #tpu.memory_space<vmem>>, vector<32x16xf32>
    %cst = arith.constant dense<0.000000e+00> : vector<6x16xf32>
    %2 = tpu.matmul %0, %1, %cst {dimension_numbers = #tpu.dot_dimension_numbers<[1], [0], [0], [1], [0, 0, 1, 1], [], []>} : vector<6x32xf32>, vector<32x16xf32>, vector<6x16xf32> -> vector<6x16xf32>
    %c0_3 = arith.constant 0 : index
    %c0_4 = arith.constant 0 : index
    %3 = vector.load %arg3[%c0_3, %c0_4] : memref<1x16xf32, #tpu.memory_space<vmem>>, vector<1x16xf32>
    %4 = vector.broadcast %3 : vector<1x16xf32> to vector<6x16xf32>
    %5 = arith.addf %2, %4 : vector<6x16xf32>
    %cst_5 = arith.constant 0.000000e+00 : f32
    %6 = vector.broadcast %cst_5 : f32 to vector<6x16xf32>
    %7 = arith.maximumf %5, %6 : vector<6x16xf32>
    %c0_6 = arith.constant 0 : index
    %c0_7 = arith.constant 0 : index
    %8 = vector.load %arg4[%c0_6, %c0_7] : memref<1x16xf32, #tpu.memory_space<vmem>>, vector<1x16xf32>
    %cst_8 = arith.constant dense<0.000000e+00> : vector<1x6xf32>
    %9 = tpu.matmul %8, %7, %cst_8 {dimension_numbers = #tpu.dot_dimension_numbers<[1], [1], [0], [0], [0, 0, 1, 0], [], []>} : vector<1x16xf32>, vector<6x16xf32>, vector<1x6xf32> -> vector<1x6xf32>
    %c0_9 = arith.constant 0 : index
    %10 = memref.load %arg5[%c0_9] : memref<1xf32, #tpu.memory_space<smem>>
    %11 = vector.broadcast %10 : f32 to vector<1x6xf32>
    %12 = arith.addf %9, %11 : vector<1x6xf32>
    %13 = arith.negf %12 : vector<1x6xf32>
    %14 = math.exp %13 : vector<1x6xf32>
    %cst_10 = arith.constant 1.000000e+00 : f32
    %15 = vector.broadcast %cst_10 : f32 to vector<1x6xf32>
    %16 = arith.addf %15, %14 : vector<1x6xf32>
    %17 = arith.divf %15, %16 : vector<1x6xf32>
    %cst_11 = arith.constant 4.000000e+00 : f32
    %18 = vector.broadcast %cst_11 : f32 to vector<1x6xf32>
    %19 = arith.mulf %17, %18 : vector<1x6xf32>
    %cst_12 = arith.constant 1.000000e+00 : f32
    %20 = vector.broadcast %cst_12 : f32 to vector<1x6xf32>
    %21 = arith.addf %19, %20 : vector<1x6xf32>
    %c0_13 = arith.constant 0 : index
    %c0_14 = arith.constant 0 : index
    %22 = vector.load %arg6[%c0_13, %c0_14] : memref<1x6xf32, #tpu.memory_space<vmem>>, vector<1x6xf32>
    tpu.vector_store %arg6[%c0_13, %c0_14], %21 {strides = array<i32>} : memref<1x6xf32, #tpu.memory_space<vmem>>, vector<1x6xf32>,
    return
  }
  func.func @transform_0(%arg0: i32) -> (i32, i32) {
    %c0_i32 = arith.constant 0 : i32
    %c0_i32_0 = arith.constant 0 : i32
    return %arg0, %c0_i32 : i32, i32
  }
  func.func @transform_1(%arg0: i32) -> (i32, i32) {
    %c0_i32 = arith.constant 0 : i32
    %c0_i32_0 = arith.constant 0 : i32
    %c0_i32_1 = arith.constant 0 : i32
    return %c0_i32, %c0_i32_0 : i32, i32
  }
  func.func @transform_2(%arg0: i32) -> (i32, i32) {
    %c0_i32 = arith.constant 0 : i32
    %c0_i32_0 = arith.constant 0 : i32
    %c0_i32_1 = arith.constant 0 : i32
    return %c0_i32, %c0_i32_0 : i32, i32
  }
  func.func @transform_3(%arg0: i32) -> (i32, i32) {
    %c0_i32 = arith.constant 0 : i32
    %c0_i32_0 = arith.constant 0 : i32
    %c0_i32_1 = arith.constant 0 : i32
    return %c0_i32, %c0_i32_0 : i32, i32
  }
  func.func @transform_4(%arg0: i32) -> i32 {
    %c0_i32 = arith.constant 0 : i32
    %c0_i32_0 = arith.constant 0 : i32
    return %c0_i32 : i32
  }
  func.func @transform_5(%arg0: i32) -> (i32, i32) {
    %c0_i32 = arith.constant 0 : i32
    %c0_i32_0 = arith.constant 0 : i32
    return %c0_i32, %arg0 : i32, i32
  }
}

module attributes {stable_mosaic.version = 11 : i64} {
  func.func @_regression_head_kernel(%arg0: i32, %arg1: memref<6x32xf32, #tpu.memory_space<vmem>>, %arg2: memref<32x16xf32, #tpu.memory_space<vmem>>, %arg3: memref<1x16xf32, #tpu.memory_space<vmem>>, %arg4: memref<1x16xf32, #tpu.memory_space<vmem>>, %arg5: memref<1xf32, #tpu.memory_space<smem>>, %arg6: memref<1x6xf32, #tpu.memory_space<vmem>>) attributes {dimension_semantics = [#tpu.dimension_semantics<parallel>], iteration_bounds = array<i64: 1>, scalar_prefetch = 0 : i64, scratch_operands = 0 : i64, tpu.core_type = #tpu.core_type<tc>, window_params = [{transform_indices = @transform_0, window_bounds = array<i64: 6, 32>}, {pipeline_mode = #tpu.pipeline_mode<synchronous>, transform_indices = @transform_1, window_bounds = array<i64: 32, 16>}, {pipeline_mode = #tpu.pipeline_mode<synchronous>, transform_indices = @transform_2, window_bounds = array<i64: 1, 16>}, {pipeline_mode = #tpu.pipeline_mode<synchronous>, transform_indices = @transform_3, window_bounds = array<i64: 1, 16>}, {transform_indices = @transform_4, window_bounds = array<i64: 1>}, {transform_indices = @transform_5, window_bounds = array<i64: 1, 6>}]} {
    %c0 = arith.constant 0 : index
    %c0_0 = arith.constant 0 : index
    %0 = vector.load %arg1[%c0, %c0_0] : memref<6x32xf32, #tpu.memory_space<vmem>>, vector<6x32xf32>
    %c0_1 = arith.constant 0 : index
    %c0_2 = arith.constant 0 : index
    %1 = vector.load %arg2[%c0_1, %c0_2] : memref<32x16xf32, #tpu.memory_space<vmem>>, vector<32x16xf32>
    %cst = arith.constant dense<0.000000e+00> : vector<6x16xf32>
    %2 = tpu.matmul %0, %1, %cst {dimension_numbers = #tpu.dot_dimension_numbers<[1], [0], [0], [1], [0, 0, 1, 1], [], []>} : vector<6x32xf32>, vector<32x16xf32>, vector<6x16xf32> -> vector<6x16xf32>
    %c0_3 = arith.constant 0 : index
    %c0_4 = arith.constant 0 : index
    %3 = vector.load %arg3[%c0_3, %c0_4] : memref<1x16xf32, #tpu.memory_space<vmem>>, vector<1x16xf32>
    %4 = vector.broadcast %3 : vector<1x16xf32> to vector<6x16xf32>
    %5 = arith.addf %2, %4 : vector<6x16xf32>
    %cst_5 = arith.constant 0.000000e+00 : f32
    %6 = vector.broadcast %cst_5 : f32 to vector<6x16xf32>
    %7 = arith.maximumf %5, %6 : vector<6x16xf32>
    %c0_6 = arith.constant 0 : index
    %c0_7 = arith.constant 0 : index
    %8 = vector.load %arg4[%c0_6, %c0_7] : memref<1x16xf32, #tpu.memory_space<vmem>>, vector<1x16xf32>
    %cst_8 = arith.constant dense<0.000000e+00> : vector<1x6xf32>
    %9 = tpu.matmul %8, %7, %cst_8 {dimension_numbers = #tpu.dot_dimension_numbers<[1], [1], [0], [0], [0, 0, 1, 0], [], []>} : vector<1x16xf32>, vector<6x16xf32>, vector<1x6xf32> -> vector<1x6xf32>
    %c0_9 = arith.constant 0 : index
    %10 = memref.load %arg5[%c0_9] : memref<1xf32, #tpu.memory_space<smem>>
    %11 = vector.broadcast %10 : f32 to vector<1x6xf32>
    %12 = arith.addf %9, %11 : vector<1x6xf32>
    %13 = arith.negf %12 : vector<1x6xf32>
    %14 = math.exp %13 : vector<1x6xf32>
    %cst_10 = arith.constant 1.000000e+00 : f32
    %15 = vector.broadcast %cst_10 : f32 to vector<1x6xf32>
    %16 = arith.addf %15, %14 : vector<1x6xf32>
    %17 = arith.divf %15, %16 : vector<1x6xf32>
    %cst_11 = arith.constant 4.000000e+00 : f32
    %18 = vector.broadcast %cst_11 : f32 to vector<1x6xf32>
    %19 = arith.mulf %17, %18 : vector<1x6xf32>
    %cst_12 = arith.constant 1.000000e+00 : f32
    %20 = vector.broadcast %cst_12 : f32 to vector<1x6xf32>
    %21 = arith.addf %19, %20 : vector<1x6xf32>
    %c0_13 = arith.constant 0 : index
    %c0_14 = arith.constant 0 : index
    %22 = vector.load %arg6[%c0_13, %c0_14] : memref<1x6xf32, #tpu.memory_space<vmem>>, vector<1x6xf32>
    tpu.vector_store %arg6[%c0_13, %c0_14], %21 {strides = array<i32>} : memref<1x6xf32, #tpu.memory_space<vmem>>, vector<1x6xf32>,
    return
  }
  func.func @transform_0(%arg0: i32) -> (i32, i32) {
    %c0_i32 = arith.constant 0 : i32
    %c0_i32_0 = arith.constant 0 : i32
    return %arg0, %c0_i32 : i32, i32
  }
  func.func @transform_1(%arg0: i32) -> (i32, i32) {
    %c0_i32 = arith.constant 0 : i32
    %c0_i32_0 = arith.constant 0 : i32
    %c0_i32_1 = arith.constant 0 : i32
    return %c0_i32, %c0_i32_0 : i32, i32
  }
  func.func @transform_2(%arg0: i32) -> (i32, i32) {
    %c0_i32 = arith.constant 0 : i32
    %c0_i32_0 = arith.constant 0 : i32
    %c0_i32_1 = arith.constant 0 : i32
    return %c0_i32, %c0_i32_0 : i32, i32
  }
  func.func @transform_3(%arg0: i32) -> (i32, i32) {
    %c0_i32 = arith.constant 0 : i32
    %c0_i32_0 = arith.constant 0 : i32
    %c0_i32_1 = arith.constant 0 : i32
    return %c0_i32, %c0_i32_0 : i32, i32
  }
  func.func @transform_4(%arg0: i32) -> i32 {
    %c0_i32 = arith.constant 0 : i32
    %c0_i32_0 = arith.constant 0 : i32
    return %c0_i32 : i32
  }
  func.func @transform_5(%arg0: i32) -> (i32, i32) {
    %c0_i32 = arith.constant 0 : i32
    %c0_i32_0 = arith.constant 0 : i32
    return %c0_i32, %arg0 : i32, i32
  }
}

</mosaic_0001>

<llo_original>
// kernel: tpu_custom_call.1
$region0: #{tpu_custom_call.1}
  #allocation0 [shape = 'u32[]', space=smem, size = 0x4, offset = 0x4, fixed_abs, tag = 'smem constant byte address 0x4 - core index']
  #allocation1 [shape = 'u32[144,128]{1,0:T(1,128)}', space=vmem, size = 0x12000, scoped, tag = 'internal scratch']
  #allocation2 [shape = 'f32[1]{0:T(128)S(6)}', space=smem, size = 0x200, scoped, tag = 'scoped memory for tpu_custom_call.1']
  %s0 = inlined_call_operand.vmem [shape: f32[6,32], index: 0, kind: input, shape index: {}]
  %s1 = inlined_call_operand.vmem [shape: f32[32,16], index: 1, kind: input, shape index: {}]
  %s2 = inlined_call_operand.vmem [shape: f32[1,16], index: 2, kind: input, shape index: {}]
  %s3 = inlined_call_operand.vmem [shape: f32[1,16], index: 3, kind: input, shape index: {}]
  %s4 = inlined_call_operand.<no memory space> [shape: f32[1], index: 4, kind: input, shape index: {}]
  %s5 = inlined_call_operand.hbm [shape: f32[1,6], index: 5, kind: output, shape index: {}]
  %s6 = sld [smem:[#allocation0]]
  $region30: #{tpu_custom_call.1} parent=0
    _
  %s8 = ssub.s32 1, %s6
  %s9 = scalar_select 0, %s8, %s6
  %10 = sst [smem:[#allocation2]] %s4
  $region1: #{tpu_custom_call.1} parent=0
    #allocation3 [shape = 'u8[512]{0}', space=vmem, size = 0x400, scoped, tag = 'output window, operand 0, single buffered']
    #allocation4 [shape = 's32[1]{0}', space=sflag, size = 0x4, scoped, tag = 'scoped memory for tpu_custom_call.1']
    %11 = vsyncpa [#allocation4], 0
    // Predicated region
    $region2: #{tpu_custom_call.1} parent=1 // pred_check
      _
    $region3: #{tpu_custom_call.1} parent=1 // pred_check_branch
      %13 = sbr.rel (0) target = $region5
    $region4: #{tpu_custom_call.1} parent=1 // pred_region
      _
    $region5: #{tpu_custom_call.1} parent=1 // pred_fallthru
      _
    // Predicated region
    $region6: #{tpu_custom_call.1} parent=1 // pred_check
      _
    $region7: #{tpu_custom_call.1} parent=1 // pred_check_branch
      %15 = sbr.rel (0) target = $region9
    $region8: #{tpu_custom_call.1} parent=1 // pred_region
      _
    $region9: #{tpu_custom_call.1} parent=1 // pred_fallthru
      _
    // Predicated region
    $region10: #{tpu_custom_call.1} parent=1 // pred_check
      _
    $region11: #{tpu_custom_call.1} parent=1 // pred_check_branch
      %17 = sbr.rel (0) target = $region13
    $region12: #{tpu_custom_call.1} parent=1 // pred_region
      _
    $region13: #{tpu_custom_call.1} parent=1 // pred_fallthru
      _
    // Predicated region
    $region14: #{tpu_custom_call.1} parent=1 // pred_check
      _
    $region15: #{tpu_custom_call.1} parent=1 // pred_check_branch
      %19 = sbr.rel (0) target = $region17
    $region16: #{tpu_custom_call.1} parent=1 // pred_region
      _
    $region17: #{tpu_custom_call.1} parent=1 // pred_fallthru
      _
    // Predicated region
    $region18: #{tpu_custom_call.1} parent=1 // pred_check
      _
    $region19: #{tpu_custom_call.1} parent=1 // pred_check_branch
      %21 = sbr.rel (0) target = $region21
    $region20: #{tpu_custom_call.1} parent=1 // pred_region
      _
    $region21: #{tpu_custom_call.1} parent=1 // pred_fallthru
      _
    %v22 = vld [vmem:[%s0] sm:$0x3f]
    %v23 = vld [vmem:[%s1] sm:$0xff]
    %v24 = vld [vmem:[%s1 + $0x8] sm:$0xff]
    %v25 = vld [vmem:[%s1 + $0x10] sm:$0xff]
    %v26 = vld [vmem:[%s1 + $0x18] sm:$0xff]
    %v27 = vld [vmem:[%s2] sm:$0x1]
    %v29 = vlaneseq
    %v30 = vshrl.u32 %v29, 7
    %v31 = vsub.s32 0, %v30
    %v32 = vrot.slane %v27, %v31
    %vm34 = vcmask 261120
    %v36 = vsel %vm34, %v22, 0
    %38 = vmatprep.subr.mxu0 0.0
    %39 = vmatpush1.msra.mxu0 0.0
    %40 = vmatprep.subr.mxu0 0.0
    %41 = vmatpush1.msra.mxu0 0.0
    %42 = vmatprep.subr.mxu0 0.0
    %43 = vmatpush1.msra.mxu0 0.0
    %44 = vmatprep.subr.mxu0 0.0
    %45 = vmatpush1.msra.mxu0 0.0
    %46 = vmatprep.subr.mxu0 0.0
    %47 = vmatpush1.msra.mxu0 0.0
    %48 = vmatprep.subr.mxu0 0.0
    %49 = vmatpush1.msra.mxu0 0.0
    %50 = vmatprep.subr.mxu0 0.0
    %51 = vmatpush1.msra.mxu0 0.0
    %52 = vmatprep.subr.mxu0 0.0
    %53 = vmatpush1.msra.mxu0 0.0
    %54 = vmatprep.subr.mxu0 0.0
    %55 = vmatpush1.msra.mxu0 0.0
    %56 = vmatprep.subr.mxu0 0.0
    %57 = vmatpush1.msra.mxu0 0.0
    %58 = vmatprep.subr.mxu0 0.0
    %59 = vmatpush1.msra.mxu0 0.0
    %60 = vmatprep.subr.mxu0 0.0
    %61 = vmatpush1.msra.mxu0 0.0
    %62 = vmatprep.subr.mxu0 0.0
    %63 = vmatpush1.msra.mxu0 %v26
    %64 = vmatprep.subr.mxu0 0.0
    %65 = vmatpush1.msra.mxu0 %v25
    %66 = vmatprep.subr.mxu0 0.0
    %67 = vmatpush1.msra.mxu0 %v24
    %68 = vmatprep.subr.mxu0 0.0
    %69 = vmatpush1.msra.mxu0 %v23
    %70 = vmatprep.subr.mxu0 0.0
    %71 = vmatpush2.msra.mxu0 0.0
    %72 = vmatprep.subr.mxu0 0.0
    %73 = vmatpush2.msra.mxu0 0.0
    %74 = vmatprep.subr.mxu0 0.0
    %75 = vmatpush2.msra.mxu0 0.0
    %76 = vmatprep.subr.mxu0 0.0
    %77 = vmatpush2.msra.mxu0 0.0
    %78 = vmatprep.subr.mxu0 0.0
    %79 = vmatpush2.msra.mxu0 0.0
    %80 = vmatprep.subr.mxu0 0.0
    %81 = vmatpush2.msra.mxu0 0.0
    %82 = vmatprep.subr.mxu0 0.0
    %83 = vmatpush2.msra.mxu0 0.0
    %84 = vmatprep.subr.mxu0 0.0
    %85 = vmatpush2.msra.mxu0 0.0
    %86 = vmatprep.subr.mxu0 0.0
    %87 = vmatpush2.msra.mxu0 0.0
    %88 = vmatprep.subr.mxu0 0.0
    %89 = vmatpush2.msra.mxu0 0.0
    %90 = vmatprep.subr.mxu0 0.0
    %91 = vmatpush2.msra.mxu0 0.0
    %92 = vmatprep.subr.mxu0 0.0
    %93 = vmatpush2.msra.mxu0 0.0
    %94 = vmatprep.subr.mxu0 0.0
    %95 = vmatpush2.msra.mxu0 0.0
    %96 = vmatprep.subr.mxu0 0.0
    %97 = vmatpush2.msra.mxu0 0.0
    %98 = vmatprep.subr.mxu0 0.0
    %99 = vmatpush2.msra.mxu0 0.0
    %100 = vmatprep.subr.mxu0 0.0
    %101 = vmatpush2.msra.mxu0 0.0
    %102 = vmatprep.mubr.f32.mxu0 0.0
    %103 = vmatmul.mubr.f32.gmra.mxu0 %v36
    %v104 = vpop.f32.mrf.mxu0
    %v105 = vadd.f32 %v32, %v104
    %v106 = vpop.f32.mrf.mxu0
    %107 = vdwg.mxu0
    %v108 = vmax.f32 %v105, 0.0
    %v109 = vld [vmem:[%s3] sm:$0x1]
    %s110 = sld [smem:[#allocation2]]
    %v111 = vstv %s110
    %vm112 = vcmask 130048
    %v114 = vsel %vm112, %v109, 0
    %v117 = vsel %vm112, %v108, 0
    %119 = vmatprep.subr.mxu0 0.0
    %120 = vmatpush1.xpose.msra.mxu0 0.0
    %121 = vmatprep.subr.mxu0 0.0
    %122 = vmatpush1.xpose.msra.mxu0 0.0
    %123 = vmatprep.subr.mxu0 0.0
    %124 = vmatpush1.xpose.msra.mxu0 0.0
    %125 = vmatprep.subr.mxu0 0.0
    %126 = vmatpush1.xpose.msra.mxu0 0.0
    %127 = vmatprep.subr.mxu0 0.0
    %128 = vmatpush1.xpose.msra.mxu0 0.0
    %129 = vmatprep.subr.mxu0 0.0
    %130 = vmatpush1.xpose.msra.mxu0 0.0
    %131 = vmatprep.subr.mxu0 0.0
    %132 = vmatpush1.xpose.msra.mxu0 0.0
    %133 = vmatprep.subr.mxu0 0.0
    %134 = vmatpush1.xpose.msra.mxu0 0.0
    %135 = vmatprep.subr.mxu0 0.0
    %136 = vmatpush1.xpose.msra.mxu0 0.0
    %137 = vmatprep.subr.mxu0 0.0
    %138 = vmatpush1.xpose.msra.mxu0 0.0
    %139 = vmatprep.subr.mxu0 0.0
    %140 = vmatpush1.xpose.msra.mxu0 0.0
    %141 = vmatprep.subr.mxu0 0.0
    %142 = vmatpush1.xpose.msra.mxu0 0.0
    %143 = vmatprep.subr.mxu0 0.0
    %144 = vmatpush1.xpose.msra.mxu0 0.0
    %145 = vmatprep.subr.mxu0 0.0
    %146 = vmatpush1.xpose.msra.mxu0 0.0
    %147 = vmatprep.subr.mxu0 0.0
    %148 = vmatpush1.xpose.msra.mxu0 0.0
    %149 = vmatprep.subr.mxu0 0.0
    %150 = vmatpush1.xpose.msra.mxu0 %v117
    %151 = vmatprep.subr.mxu0 0.0
    %152 = vmatpush2.xpose.msra.mxu0 0.0
    %153 = vmatprep.subr.mxu0 0.0
    %154 = vmatpush2.xpose.msra.mxu0 0.0
    %155 = vmatprep.subr.mxu0 0.0
    %156 = vmatpush2.xpose.msra.mxu0 0.0
    %157 = vmatprep.subr.mxu0 0.0
    %158 = vmatpush2.xpose.msra.mxu0 0.0
    %159 = vmatprep.subr.mxu0 0.0
    %160 = vmatpush2.xpose.msra.mxu0 0.0
    %161 = vmatprep.subr.mxu0 0.0
    %162 = vmatpush2.xpose.msra.mxu0 0.0
    %163 = vmatprep.subr.mxu0 0.0
    %164 = vmatpush2.xpose.msra.mxu0 0.0
    %165 = vmatprep.subr.mxu0 0.0
    %166 = vmatpush2.xpose.msra.mxu0 0.0
    %167 = vmatprep.subr.mxu0 0.0
    %168 = vmatpush2.xpose.msra.mxu0 0.0
    %169 = vmatprep.subr.mxu0 0.0
    %170 = vmatpush2.xpose.msra.mxu0 0.0
    %171 = vmatprep.subr.mxu0 0.0
    %172 = vmatpush2.xpose.msra.mxu0 0.0
    %173 = vmatprep.subr.mxu0 0.0
    %174 = vmatpush2.xpose.msra.mxu0 0.0
    %175 = vmatprep.subr.mxu0 0.0
    %176 = vmatpush2.xpose.msra.mxu0 0.0
    %177 = vmatprep.subr.mxu0 0.0
    %178 = vmatpush2.xpose.msra.mxu0 0.0
    %179 = vmatprep.subr.mxu0 0.0
    %180 = vmatpush2.xpose.msra.mxu0 0.0
    %181 = vmatprep.subr.mxu0 0.0
    %182 = vmatpush2.xpose.msra.mxu0 0.0
    %183 = vmatprep.mubr.f32.mxu0 0.0
    %184 = vmatmul.mubr.f32.gmra.mxu0 %v114
    %v185 = vpop.f32.mrf.mxu0
    %v186 = vadd.f32 %v111, %v185
    %v187 = vpop.f32.mrf.mxu0
    %188 = vdwg.mxu0
    %v189 = vxor.u32 %v186, 2147483648
    %v190 = vmul.f32 %v189, 1.442695
    %v191 = vpow.pop %v190
    %v192 = vadd.f32 %v191, 1.0
    %v193 = vrcp.pop %v192
    %v194 = vmul.f32 1.0, %v193
    %v195 = vmul.f32 %v194, 4.0
    %v196 = vadd.f32 %v195, 1.0
    %vm197 = vcmask 40960
    %198 = vst.msk [vmem:[#allocation3] sm:$0x1] %vm197, %v196
    // Predicated region
    $region22: #{tpu_custom_call.1} parent=1 // pred_check
      _
    $region23: #{tpu_custom_call.1} parent=1 // pred_check_branch
      %200 = sbr.rel (0) target = $region25
    $region24: #{tpu_custom_call.1} parent=1 // pred_region
      %s202 = ssub.s32 16, 16
      %203 = vsyncadd [#allocation4], %s202
      %s205 = sshll.u32 [#allocation3], 4
      %s206 = int_to_ptr.vmem [resolvable:$true] %s205
      %208 = dma.vmem_to_hbm [thread:$0]  %s206, 16, %s5, [#allocation4]
    $region25: #{tpu_custom_call.1} parent=1 // pred_fallthru
      _
    // Predicated region
    $region26: #{tpu_custom_call.1} parent=1 // pred_check
      _
    $region27: #{tpu_custom_call.1} parent=1 // pred_check_branch
      %210 = sbr.rel (0) target = $region29
    $region28: #{tpu_custom_call.1} parent=1 // pred_region
      %211 = dma.done [#allocation4], 16
    $region29: #{tpu_custom_call.1} parent=1 // pred_fallthru
      _
    %212 = vsyncpa [#allocation4], 1

// kernel: tpu_custom_call.1
$region0: #{tpu_custom_call.1}
  #allocation0 [shape = 'u32[]', space=smem, size = 0x4, offset = 0x4, fixed_abs, tag = 'smem constant byte address 0x4 - core index']
  #allocation1 [shape = 'u32[144,128]{1,0:T(1,128)}', space=vmem, size = 0x12000, scoped, tag = 'internal scratch']
  #allocation2 [shape = 'f32[1]{0:T(128)S(6)}', space=smem, size = 0x200, scoped, tag = 'scoped memory for tpu_custom_call.1']
  %s0 = inlined_call_operand.vmem [shape: f32[6,32], index: 0, kind: input, shape index: {}]
  %s1 = inlined_call_operand.vmem [shape: f32[32,16], index: 1, kind: input, shape index: {}]
  %s2 = inlined_call_operand.vmem [shape: f32[1,16], index: 2, kind: input, shape index: {}]
  %s3 = inlined_call_operand.vmem [shape: f32[1,16], index: 3, kind: input, shape index: {}]
  %s4 = inlined_call_operand.<no memory space> [shape: f32[1], index: 4, kind: input, shape index: {}]
  %s5 = inlined_call_operand.hbm [shape: f32[1,6], index: 5, kind: output, shape index: {}]
  %s6 = sld [smem:[#allocation0]]
  $region30: #{tpu_custom_call.1} parent=0
    _
  %s8 = ssub.s32 1, %s6
  %s9 = scalar_select 0, %s8, %s6
  %10 = sst [smem:[#allocation2]] %s4
  $region1: #{tpu_custom_call.1} parent=0
    #allocation3 [shape = 'u8[512]{0}', space=vmem, size = 0x400, scoped, tag = 'output window, operand 0, single buffered']
    #allocation4 [shape = 's32[1]{0}', space=sflag, size = 0x4, scoped, tag = 'scoped memory for tpu_custom_call.1']
    %11 = vsyncpa [#allocation4], 0
    // Predicated region
    $region2: #{tpu_custom_call.1} parent=1 // pred_check
      _
    $region3: #{tpu_custom_call.1} parent=1 // pred_check_branch
      %13 = sbr.rel (0) target = $region5
    $region4: #{tpu_custom_call.1} parent=1 // pred_region
      _
    $region5: #{tpu_custom_call.1} parent=1 // pred_fallthru
      _
    // Predicated region
    $region6: #{tpu_custom_call.1} parent=1 // pred_check
      _
    $region7: #{tpu_custom_call.1} parent=1 // pred_check_branch
      %15 = sbr.rel (0) target = $region9
    $region8: #{tpu_custom_call.1} parent=1 // pred_region
      _
    $region9: #{tpu_custom_call.1} parent=1 // pred_fallthru
      _
    // Predicated region
    $region10: #{tpu_custom_call.1} parent=1 // pred_check
      _
    $region11: #{tpu_custom_call.1} parent=1 // pred_check_branch
      %17 = sbr.rel (0) target = $region13
    $region12: #{tpu_custom_call.1} parent=1 // pred_region
      _
    $region13: #{tpu_custom_call.1} parent=1 // pred_fallthru
      _
    // Predicated region
    $region14: #{tpu_custom_call.1} parent=1 // pred_check
      _
    $region15: #{tpu_custom_call.1} parent=1 // pred_check_branch
      %19 = sbr.rel (0) target = $region17
    $region16: #{tpu_custom_call.1} parent=1 // pred_region
      _
    $region17: #{tpu_custom_call.1} parent=1 // pred_fallthru
      _
    // Predicated region
    $region18: #{tpu_custom_call.1} parent=1 // pred_check
      _
    $region19: #{tpu_custom_call.1} parent=1 // pred_check_branch
      %21 = sbr.rel (0) target = $region21
    $region20: #{tpu_custom_call.1} parent=1 // pred_region
      _
    $region21: #{tpu_custom_call.1} parent=1 // pred_fallthru
      _
    %v22 = vld [vmem:[%s0] sm:$0x3f]
    %v23 = vld [vmem:[%s1] sm:$0xff]
    %v24 = vld [vmem:[%s1 + $0x8] sm:$0xff]
    %v25 = vld [vmem:[%s1 + $0x10] sm:$0xff]
    %v26 = vld [vmem:[%s1 + $0x18] sm:$0xff]
    %v27 = vld [vmem:[%s2] sm:$0x1]
    %v29 = vlaneseq
    %v30 = vshrl.u32 %v29, 7
    %v31 = vsub.s32 0, %v30
    %v32 = vrot.slane %v27, %v31
    %vm34 = vcmask 261120
    %v36 = vsel %vm34, %v22, 0
    %38 = vmatprep.subr.mxu0 0.0
    %39 = vmatpush1.msra.mxu0 0.0
    %40 = vmatprep.subr.mxu0 0.0
    %41 = vmatpush1.msra.mxu0 0.0
    %42 = vmatprep.subr.mxu0 0.0
    %43 = vmatpush1.msra.mxu0 0.0
    %44 = vmatprep.subr.mxu0 0.0
    %45 = vmatpush1.msra.mxu0 0.0
    %46 = vmatprep.subr.mxu0 0.0
    %47 = vmatpush1.msra.mxu0 0.0
    %48 = vmatprep.subr.mxu0 0.0
    %49 = vmatpush1.msra.mxu0 0.0
    %50 = vmatprep.subr.mxu0 0.0
    %51 = vmatpush1.msra.mxu0 0.0
    %52 = vmatprep.subr.mxu0 0.0
    %53 = vmatpush1.msra.mxu0 0.0
    %54 = vmatprep.subr.mxu0 0.0
    %55 = vmatpush1.msra.mxu0 0.0
    %56 = vmatprep.subr.mxu0 0.0
    %57 = vmatpush1.msra.mxu0 0.0
    %58 = vmatprep.subr.mxu0 0.0
    %59 = vmatpush1.msra.mxu0 0.0
    %60 = vmatprep.subr.mxu0 0.0
    %61 = vmatpush1.msra.mxu0 0.0
    %62 = vmatprep.subr.mxu0 0.0
    %63 = vmatpush1.msra.mxu0 %v26
    %64 = vmatprep.subr.mxu0 0.0
    %65 = vmatpush1.msra.mxu0 %v25
    %66 = vmatprep.subr.mxu0 0.0
    %67 = vmatpush1.msra.mxu0 %v24
    %68 = vmatprep.subr.mxu0 0.0
    %69 = vmatpush1.msra.mxu0 %v23
    %70 = vmatprep.subr.mxu0 0.0
    %71 = vmatpush2.msra.mxu0 0.0
    %72 = vmatprep.subr.mxu0 0.0
    %73 = vmatpush2.msra.mxu0 0.0
    %74 = vmatprep.subr.mxu0 0.0
    %75 = vmatpush2.msra.mxu0 0.0
    %76 = vmatprep.subr.mxu0 0.0
    %77 = vmatpush2.msra.mxu0 0.0
    %78 = vmatprep.subr.mxu0 0.0
    %79 = vmatpush2.msra.mxu0 0.0
    %80 = vmatprep.subr.mxu0 0.0
    %81 = vmatpush2.msra.mxu0 0.0
    %82 = vmatprep.subr.mxu0 0.0
    %83 = vmatpush2.msra.mxu0 0.0
    %84 = vmatprep.subr.mxu0 0.0
    %85 = vmatpush2.msra.mxu0 0.0
    %86 = vmatprep.subr.mxu0 0.0
    %87 = vmatpush2.msra.mxu0 0.0
    %88 = vmatprep.subr.mxu0 0.0
    %89 = vmatpush2.msra.mxu0 0.0
    %90 = vmatprep.subr.mxu0 0.0
    %91 = vmatpush2.msra.mxu0 0.0
    %92 = vmatprep.subr.mxu0 0.0
    %93 = vmatpush2.msra.mxu0 0.0
    %94 = vmatprep.subr.mxu0 0.0
    %95 = vmatpush2.msra.mxu0 0.0
    %96 = vmatprep.subr.mxu0 0.0
    %97 = vmatpush2.msra.mxu0 0.0
    %98 = vmatprep.subr.mxu0 0.0
    %99 = vmatpush2.msra.mxu0 0.0
    %100 = vmatprep.subr.mxu0 0.0
    %101 = vmatpush2.msra.mxu0 0.0
    %102 = vmatprep.mubr.f32.mxu0 0.0
    %103 = vmatmul.mubr.f32.gmra.mxu0 %v36
    %v104 = vpop.f32.mrf.mxu0
    %v105 = vadd.f32 %v32, %v104
    %v106 = vpop.f32.mrf.mxu0
    %107 = vdwg.mxu0
    %v108 = vmax.f32 %v105, 0.0
    %v109 = vld [vmem:[%s3] sm:$0x1]
    %s110 = sld [smem:[#allocation2]]
    %v111 = vstv %s110
    %vm112 = vcmask 130048
    %v114 = vsel %vm112, %v109, 0
    %v117 = vsel %vm112, %v108, 0
    %119 = vmatprep.subr.mxu0 0.0
    %120 = vmatpush1.xpose.msra.mxu0 0.0
    %121 = vmatprep.subr.mxu0 0.0
    %122 = vmatpush1.xpose.msra.mxu0 0.0
    %123 = vmatprep.subr.mxu0 0.0
    %124 = vmatpush1.xpose.msra.mxu0 0.0
    %125 = vmatprep.subr.mxu0 0.0
    %126 = vmatpush1.xpose.msra.mxu0 0.0
    %127 = vmatprep.subr.mxu0 0.0
    %128 = vmatpush1.xpose.msra.mxu0 0.0
    %129 = vmatprep.subr.mxu0 0.0
    %130 = vmatpush1.xpose.msra.mxu0 0.0
    %131 = vmatprep.subr.mxu0 0.0
    %132 = vmatpush1.xpose.msra.mxu0 0.0
    %133 = vmatprep.subr.mxu0 0.0
    %134 = vmatpush1.xpose.msra.mxu0 0.0
    %135 = vmatprep.subr.mxu0 0.0
    %136 = vmatpush1.xpose.msra.mxu0 0.0
    %137 = vmatprep.subr.mxu0 0.0
    %138 = vmatpush1.xpose.msra.mxu0 0.0
    %139 = vmatprep.subr.mxu0 0.0
    %140 = vmatpush1.xpose.msra.mxu0 0.0
    %141 = vmatprep.subr.mxu0 0.0
    %142 = vmatpush1.xpose.msra.mxu0 0.0
    %143 = vmatprep.subr.mxu0 0.0
    %144 = vmatpush1.xpose.msra.mxu0 0.0
    %145 = vmatprep.subr.mxu0 0.0
    %146 = vmatpush1.xpose.msra.mxu0 0.0
    %147 = vmatprep.subr.mxu0 0.0
    %148 = vmatpush1.xpose.msra.mxu0 0.0
    %149 = vmatprep.subr.mxu0 0.0
    %150 = vmatpush1.xpose.msra.mxu0 %v117
    %151 = vmatprep.subr.mxu0 0.0
    %152 = vmatpush2.xpose.msra.mxu0 0.0
    %153 = vmatprep.subr.mxu0 0.0
    %154 = vmatpush2.xpose.msra.mxu0 0.0
    %155 = vmatprep.subr.mxu0 0.0
    %156 = vmatpush2.xpose.msra.mxu0 0.0
    %157 = vmatprep.subr.mxu0 0.0
    %158 = vmatpush2.xpose.msra.mxu0 0.0
    %159 = vmatprep.subr.mxu0 0.0
    %160 = vmatpush2.xpose.msra.mxu0 0.0
    %161 = vmatprep.subr.mxu0 0.0
    %162 = vmatpush2.xpose.msra.mxu0 0.0
    %163 = vmatprep.subr.mxu0 0.0
    %164 = vmatpush2.xpose.msra.mxu0 0.0
    %165 = vmatprep.subr.mxu0 0.0
    %166 = vmatpush2.xpose.msra.mxu0 0.0
    %167 = vmatprep.subr.mxu0 0.0
    %168 = vmatpush2.xpose.msra.mxu0 0.0
    %169 = vmatprep.subr.mxu0 0.0
    %170 = vmatpush2.xpose.msra.mxu0 0.0
    %171 = vmatprep.subr.mxu0 0.0
    %172 = vmatpush2.xpose.msra.mxu0 0.0
    %173 = vmatprep.subr.mxu0 0.0
    %174 = vmatpush2.xpose.msra.mxu0 0.0
    %175 = vmatprep.subr.mxu0 0.0
    %176 = vmatpush2.xpose.msra.mxu0 0.0
    %177 = vmatprep.subr.mxu0 0.0
    %178 = vmatpush2.xpose.msra.mxu0 0.0
    %179 = vmatprep.subr.mxu0 0.0
    %180 = vmatpush2.xpose.msra.mxu0 0.0
    %181 = vmatprep.subr.mxu0 0.0
    %182 = vmatpush2.xpose.msra.mxu0 0.0
    %183 = vmatprep.mubr.f32.mxu0 0.0
    %184 = vmatmul.mubr.f32.gmra.mxu0 %v114
    %v185 = vpop.f32.mrf.mxu0
    %v186 = vadd.f32 %v111, %v185
    %v187 = vpop.f32.mrf.mxu0
    %188 = vdwg.mxu0
    %v189 = vxor.u32 %v186, 2147483648
    %v190 = vmul.f32 %v189, 1.442695
    %v191 = vpow.pop %v190
    %v192 = vadd.f32 %v191, 1.0
    %v193 = vrcp.pop %v192
    %v194 = vmul.f32 1.0, %v193
    %v195 = vmul.f32 %v194, 4.0
    %v196 = vadd.f32 %v195, 1.0
    %vm197 = vcmask 40960
    %198 = vst.msk [vmem:[#allocation3] sm:$0x1] %vm197, %v196
    // Predicated region
    $region22: #{tpu_custom_call.1} parent=1 // pred_check
      _
    $region23: #{tpu_custom_call.1} parent=1 // pred_check_branch
      %200 = sbr.rel (0) target = $region25
    $region24: #{tpu_custom_call.1} parent=1 // pred_region
      %s202 = ssub.s32 16, 16
      %203 = vsyncadd [#allocation4], %s202
      %s205 = sshll.u32 [#allocation3], 4
      %s206 = int_to_ptr.vmem [resolvable:$true] %s205
      %208 = dma.vmem_to_hbm [thread:$0]  %s206, 16, %s5, [#allocation4]
    $region25: #{tpu_custom_call.1} parent=1 // pred_fallthru
      _
    // Predicated region
    $region26: #{tpu_custom_call.1} parent=1 // pred_check
      _
    $region27: #{tpu_custom_call.1} parent=1 // pred_check_branch
      %210 = sbr.rel (0) target = $region29
    $region28: #{tpu_custom_call.1} parent=1 // pred_region
      %211 = dma.done [#allocation4], 16
    $region29: #{tpu_custom_call.1} parent=1 // pred_fallthru
      _
    %212 = vsyncpa [#allocation4], 1

</llo_original>
